<compile_context>
chip_gen: v6e
topology: v6e:2x2x1
jax: 0.10.0
libtpu: 0.0.40
codegen_flags: <defaults>
</compile_context>

<pallas_src>
import functools

import numpy as np
import jax
import jax.numpy as jnp
from jax.experimental import pallas as pl
from jax.experimental.pallas import tpu as pltpu
from scipy.optimize import linear_sum_assignment


def _round_up(x, m):
    return (x + m - 1) // m * m


def _next_pow2(x):
    return 1 << max(1, int(x) - 1).bit_length() if x > 1 else 1


def _pow_static(x, gamma):
    """x ** gamma; integer gamma (the PDVC default, 2) uses VPU multiplies."""
    g = float(gamma)
    if g == 0.0:
        return jnp.ones_like(x)
    if g == int(g) and int(g) >= 1:
        r = x
        for _ in range(int(g) - 1):
            r = r * x
        return r
    return x ** g  # general fallback -> EUP exp/log path


def _cost_kernel(logits_ref, obox_ref, tbox_ref, onehot_ref, c_ref,
                 *, alpha, gamma, w_bbox, w_giou):
    # logits_ref : [TM, C_pad]     prediction logits row-tile
    # obox_ref   : [TM, 2]         prediction boxes (center, length) row-tile
    # tbox_ref   : [2, T_pad]      target boxes (row0=center, row1=length), resident
    # onehot_ref : [C_pad, T_pad]  w_class * one-hot(target class id), resident
    # c_ref      : [TM, T_pad]     output cost tile
    prob = jax.nn.sigmoid(logits_ref[...].astype(jnp.float32))
    one_m_prob = 1.0 - prob

    # focal-style class cost (same formula as the PyTorch module);
    # integer gamma avoids float-exponent pow (exp+log) on the single-slot EUP.
    neg_cost = (1.0 - alpha) * _pow_static(prob, gamma) * (
        -jnp.log(one_m_prob + 1e-8))
    pos_cost = alpha * _pow_static(one_m_prob, gamma) * (-jnp.log(prob + 1e-8))
    # gather over target class ids as a one-hot matmul on the MXU; the class
    # weight is already folded into onehot_ref by the wrapper.
    cost_class = jnp.dot(pos_cost - neg_cost, onehot_ref[...],
                         preferred_element_type=jnp.float32)        # [TM, T]

    ob = obox_ref[...]
    oc = ob[:, 0:1]
    ol = ob[:, 1:2]                                                 # [TM, 1]
    tb = tbox_ref[...]
    tc = tb[0:1, :]
    tl = tb[1:2, :]                                                 # [1, T]

    # cdist(p=1) over the 2 temporal-segment coordinates
    cost_bbox = jnp.abs(oc - tc) + jnp.abs(ol - tl)                 # [TM, T]

    # box_cl_to_xy + generalized IoU for 1-D temporal segments (PDVC box_ops)
    o1 = oc - 0.5 * ol
    o2 = oc + 0.5 * ol
    t1 = tc - 0.5 * tl
    t2 = tc + 0.5 * tl
    inter = jnp.maximum(jnp.minimum(o2, t2) - jnp.maximum(o1, t1), 0.0)
    union = (o2 - o1) + (t2 - t1) - inter
    enclose = jnp.maximum(o2, t2) - jnp.minimum(o1, t1)
    # exact reciprocals hoisted once each (approx=True ~2^-12 rel err would
    # violate the 1e-4 reference tolerance); tiny floors keep padded
    # (zero-length) rows/cols NaN-free without changing the valid region.
    inv_union = 1.0 / jnp.maximum(union, 1e-12)
    inv_enclose = 1.0 / jnp.maximum(enclose, 1e-12)
    # giou = iou - (enclose - union)/enclose = inter/union + union/enclose - 1
    giou = inter * inv_union + union * inv_enclose - 1.0            # [TM, T]

    # class weight already folded into cost_class; -1 and w_giou folded here.
    c_ref[...] = cost_class + w_bbox * cost_bbox - w_giou * giou


def _choose_tm(n, c_pad, t_pad, budget_bytes=12 << 20):
    """Row-tile size: biggest multiple of 8 (<=512) fitting a ~12 MiB budget,
    so the double-buffered footprint stays below every generation's default
    scoped VMEM limit (16 MiB on v5e)."""
    per_row = 4 * 2 * (c_pad + t_pad)                 # 2x-buffered logits + out rows
    resident = 4 * 2 * (c_pad * t_pad + 2 * t_pad)    # onehot + tbox (conservative)
    avail = max(budget_bytes - resident, per_row * 8)
    tm = min(512, max(8, avail // per_row))
    tm = int(tm) // 8 * 8
    tm = min(tm, _round_up(n, 8))
    return max(8, tm)


@functools.partial(
    jax.jit,
    static_argnames=("tm", "c_pad", "cost_class", "cost_bbox", "cost_giou",
                     "cost_alpha", "cost_gamma"))
def _cost_matrix_device(logits_flat, boxes_flat, tgt_ids_pad, tgt_bbox_pad, *,
                        tm, c_pad, cost_class, cost_bbox, cost_giou,
                        cost_alpha, cost_gamma):
    """Pads inputs, runs the Pallas kernel over a row-tiled grid, and returns
    the device-sliced [N, T_pad] cost matrix (f32)."""
    n, nc = logits_flat.shape
    t_pad = tgt_ids_pad.shape[0]
    n_pad = _round_up(n, tm)

    logits = jnp.zeros((n_pad, c_pad), jnp.float32)
    logits = logits.at[:n, :nc].set(logits_flat.astype(jnp.float32))
    obox = jnp.zeros((n_pad, 2), jnp.float32)
    obox = obox.at[:n, :].set(boxes_flat.astype(jnp.float32))
    tbox = jnp.transpose(tgt_bbox_pad.astype(jnp.float32))          # [2, T_pad]
    # One-hot gather matrix with the class weight folded in; padded target
    # slots carry id == -1 and therefore produce an all-zero column.
    onehot = (tgt_ids_pad[None, :] ==
              jnp.arange(c_pad, dtype=jnp.int32)[:, None])
    onehot = onehot.astype(jnp.float32) * jnp.float32(cost_class)

    kernel = functools.partial(
        _cost_kernel, alpha=float(cost_alpha), gamma=float(cost_gamma),
        w_bbox=float(cost_bbox), w_giou=float(cost_giou))

    num_tiles = n_pad // tm
    c_full = pl.pallas_call(
        kernel,
        out_shape=jax.ShapeDtypeStruct((n_pad, t_pad), jnp.float32),
        grid_spec=pltpu.PrefetchScalarGridSpec(
            num_scalar_prefetch=0,
            grid=(num_tiles,),
            in_specs=[
                pl.BlockSpec((tm, c_pad), lambda i: (i, 0)),
                pl.BlockSpec((tm, 2), lambda i: (i, 0)),
                pl.BlockSpec((2, t_pad), lambda i: (0, 0)),
                pl.BlockSpec((c_pad, t_pad), lambda i: (0, 0)),
            ],
            out_specs=pl.BlockSpec((tm, t_pad), lambda i: (i, 0)),
        ),
        compiler_params=pltpu.CompilerParams(
            dimension_semantics=("parallel",)),
    )(logits, obox, tbox, onehot)

    # Device-side row slice so only [N, T_pad] crosses PCIe; the column
    # padding is bounded by the T bucket and kept to avoid per-T recompiles.
    return c_full[:n, :]


def compute_cost_matrix(pred_logits, pred_boxes, tgt_ids, tgt_bbox, *,
                        cost_class=1.0, cost_bbox=1.0, cost_giou=1.0,
                        cost_alpha=0.25, cost_gamma=2.0):
    """Returns C with shape [B, Q, T_total] (float32), computed in Pallas."""
    bs, nq, nc = pred_logits.shape
    n = bs * nq
    t = int(tgt_ids.shape[0])

    c_pad = _round_up(nc, 128)
    # Bucket T_pad to a power-of-two multiple of 128 so per-step variation in
    # the number of targets does not trigger fresh Mosaic compiles.
    t_pad = max(128, _next_pow2(t))
    tm = _choose_tm(n, c_pad, t_pad)

    logits_flat = jnp.reshape(pred_logits, (n, nc))
    boxes_flat = jnp.reshape(pred_boxes, (n, 2))
    tgt_ids_pad = jnp.full((t_pad,), -1, jnp.int32).at[:t].set(
        tgt_ids.astype(jnp.int32))
    tgt_bbox_pad = jnp.zeros((t_pad, 2), jnp.float32).at[:t, :].set(
        tgt_bbox.astype(jnp.float32))

    c_dev = _cost_matrix_device(
        logits_flat, boxes_flat, tgt_ids_pad, tgt_bbox_pad,
        tm=int(tm), c_pad=int(c_pad),
        cost_class=float(cost_class), cost_bbox=float(cost_bbox),
        cost_giou=float(cost_giou), cost_alpha=float(cost_alpha),
        cost_gamma=float(cost_gamma))
    c_dev = jax.block_until_ready(c_dev)
    return np.asarray(c_dev)[:, :t].reshape(bs, nq, t)


def hungarian_matcher_forward(outputs, targets, *, cost_class=1.0,
                              cost_bbox=1.0, cost_giou=1.0, cost_alpha=0.25,
                              cost_gamma=2.0):
    """Mirrors HungarianMatcher.forward (use_pseudo_box=False, verbose=False)."""
    pred_logits = outputs["pred_logits"]
    pred_boxes = outputs["pred_boxes"]
    tgt_ids = jnp.concatenate([t["labels"] for t in targets])
    tgt_bbox = jnp.concatenate([t["boxes"] for t in targets], axis=0)

    C = compute_cost_matrix(pred_logits, pred_boxes, tgt_ids, tgt_bbox,
                            cost_class=cost_class, cost_bbox=cost_bbox,
                            cost_giou=cost_giou, cost_alpha=cost_alpha,
                            cost_gamma=cost_gamma)

    # TODO(synk): linear_sum_assignment is a sequential combinatorial
    # algorithm (Hungarian), no clean Pallas equivalent — done on host like
    # the original (.cpu() + scipy), operating on the kernel-produced C.
    sizes = [int(t["boxes"].shape[0]) for t in targets]
    m2o_rate = 4
    indices, rl_indices = [], []
    col = 0
    for i, sz in enumerate(sizes):
        c_i = C[i, :, col:col + sz]
        ri, ci = linear_sum_assignment(c_i)
        indices.append((np.asarray(ri, np.int64), np.asarray(ci, np.int64)))
        ri2, ci2 = linear_sum_assignment(np.concatenate([c_i] * m2o_rate, -1))
        rl_indices.append((np.asarray(ri2, np.int64),
                           np.asarray(ci2 % sz, np.int64)))
        col += sz
    return indices, rl_indices, C


def _reference_cost_matrix(pred_logits, pred_boxes, tgt_ids, tgt_bbox, *,
                           cost_class, cost_bbox, cost_giou, alpha, gamma):
    """Pure-numpy reference of the cost-matrix math for validation."""
    logits = np.asarray(pred_logits, np.float32)
    bs, nq, nc = logits.shape
    prob = 1.0 / (1.0 + np.exp(-logits.reshape(-1, nc)))
    ob = np.asarray(pred_boxes, np.float32).reshape(-1, 2)
    ti = np.asarray(tgt_ids)
    tb = np.asarray(tgt_bbox, np.float32)

    neg = (1 - alpha) * prob ** gamma * -np.log(1 - prob + 1e-8)
    pos = alpha * (1 - prob) ** gamma * -np.log(prob + 1e-8)
    c_cls = pos[:, ti] - neg[:, ti]
    c_l1 = np.abs(ob[:, None, :] - tb[None, :, :]).sum(-1)

    o1, o2 = ob[:, 0] - 0.5 * ob[:, 1], ob[:, 0] + 0.5 * ob[:, 1]
    t1, t2 = tb[:, 0] - 0.5 * tb[:, 1], tb[:, 0] + 0.5 * tb[:, 1]
    inter = np.clip(np.minimum(o2[:, None], t2[None, :])
                    - np.maximum(o1[:, None], t1[None, :]), 0, None)
    union = (o2 - o1)[:, None] + (t2 - t1)[None, :] - inter
    iou = inter / union
    enc = np.clip(np.maximum(o2[:, None], t2[None, :])
                  - np.minimum(o1[:, None], t1[None, :]), 0, None)
    giou = iou - (enc - union) / enc
    C = cost_bbox * c_l1 + cost_class * c_cls + cost_giou * (-giou)
    return C.reshape(bs, nq, -1)


if __name__ == "__main__":
    key = jax.random.PRNGKey(0)
    bs, num_queries, num_classes = 2, 16, 10

    k1, k2, k3, k4, k5, k6 = jax.random.split(key, 6)
    pred_logits = jax.random.normal(k1, (bs, num_queries, num_classes),
                                    jnp.float32)
    # boxes are (center, length) temporal segments in (0, 1)
    pred_boxes = jnp.stack(
        [jax.random.uniform(k2, (bs, num_queries), minval=0.1, maxval=0.9),
         jax.random.uniform(k3, (bs, num_queries), minval=0.05, maxval=0.3)],
        axis=-1)

    n_tgt = [3, 4]
    targets = []
    tkeys = jax.random.split(k4, 4)
    for i, nt in enumerate(n_tgt):
        labels = jax.random.randint(tkeys[2 * i], (nt,), 0, num_classes)
        boxes = jnp.stack(
            [jax.random.uniform(tkeys[2 * i + 1], (nt,), minval=0.1, maxval=0.9),
             jax.random.uniform(jax.random.fold_in(k5, i), (nt,),
                                minval=0.05, maxval=0.3)], axis=-1)
        targets.append({"labels": labels, "boxes": boxes})

    outputs = {"pred_logits": pred_logits, "pred_boxes": pred_boxes}
    indices, rl_indices, C = hungarian_matcher_forward(
        outputs, targets, cost_class=1.0, cost_bbox=1.0, cost_giou=1.0,
        cost_alpha=0.25, cost_gamma=2.0)

    # validate the Pallas-computed cost matrix against a pure-numpy reference
    tgt_ids = jnp.concatenate([t["labels"] for t in targets])
    tgt_bbox = jnp.concatenate([t["boxes"] for t in targets], axis=0)
    C_ref = _reference_cost_matrix(pred_logits, pred_boxes, tgt_ids, tgt_bbox,
                                   cost_class=1.0, cost_bbox=1.0,
                                   cost_giou=1.0, alpha=0.25, gamma=2.0)
    assert np.allclose(C, C_ref, rtol=1e-4, atol=1e-4), \
        f"max err {np.abs(C - C_ref).max()}"

    # basic sanity on assignment shapes
    for (ri, ci), t in zip(indices, targets):
        assert len(ri) == len(ci) == min(num_queries, int(t["boxes"].shape[0]))

    print("KERNEL_OK")
</pallas_src>

<mosaic_0001>
module attributes {stable_mosaic.version = 11 : i64} {
  func.func @_cost_kernel(%arg0: i32, %arg1: memref<32x128xf32, #tpu.memory_space<vmem>>, %arg2: memref<32x2xf32, #tpu.memory_space<vmem>>, %arg3: memref<2x128xf32, #tpu.memory_space<vmem>>, %arg4: memref<128x128xf32, #tpu.memory_space<vmem>>, %arg5: memref<32x128xf32, #tpu.memory_space<vmem>>) attributes {dimension_semantics = [#tpu.dimension_semantics<parallel>], iteration_bounds = array<i64: 1>, scalar_prefetch = 0 : i64, scratch_operands = 0 : i64, tpu.core_type = #tpu.core_type<tc>, window_params = [{transform_indices = @transform_0, window_bounds = array<i64: 32, 128>}, {transform_indices = @transform_1, window_bounds = array<i64: 32, 2>}, {pipeline_mode = #tpu.pipeline_mode<synchronous>, transform_indices = @transform_2, window_bounds = array<i64: 2, 128>}, {pipeline_mode = #tpu.pipeline_mode<synchronous>, transform_indices = @transform_3, window_bounds = array<i64: 128, 128>}, {transform_indices = @transform_4, window_bounds = array<i64: 32, 128>}]} {
    %c0 = arith.constant 0 : index
    %c0_0 = arith.constant 0 : index
    %0 = vector.load %arg1[%c0, %c0_0] : memref<32x128xf32, #tpu.memory_space<vmem>>, vector<32x128xf32>
    %1 = arith.negf %0 : vector<32x128xf32>
    %2 = math.exp %1 : vector<32x128xf32>
    %cst = arith.constant 1.000000e+00 : f32
    %3 = vector.broadcast %cst : f32 to vector<32x128xf32>
    %4 = arith.addf %3, %2 : vector<32x128xf32>
    %5 = arith.divf %3, %4 : vector<32x128xf32>
    %cst_1 = arith.constant 1.000000e+00 : f32
    %6 = vector.broadcast %cst_1 : f32 to vector<32x128xf32>
    %7 = arith.subf %6, %5 : vector<32x128xf32>
    %8 = arith.mulf %5, %5 : vector<32x128xf32>
    %cst_2 = arith.constant 7.500000e-01 : f32
    %9 = vector.broadcast %cst_2 : f32 to vector<32x128xf32>
    %10 = arith.mulf %9, %8 : vector<32x128xf32>
    %cst_3 = arith.constant 9.99999993E-9 : f32
    %11 = vector.broadcast %cst_3 : f32 to vector<32x128xf32>
    %12 = arith.addf %7, %11 : vector<32x128xf32>
    %13 = math.log %12 : vector<32x128xf32>
    %cst_4 = arith.constant 0.000000e+00 : f32
    %14 = vector.broadcast %cst_4 : f32 to vector<32x128xf32>
    %15 = arith.subf %14, %13 : vector<32x128xf32>
    %16 = arith.mulf %10, %15 : vector<32x128xf32>
    %17 = arith.mulf %7, %7 : vector<32x128xf32>
    %cst_5 = arith.constant 2.500000e-01 : f32
    %18 = vector.broadcast %cst_5 : f32 to vector<32x128xf32>
    %19 = arith.mulf %18, %17 : vector<32x128xf32>
    %cst_6 = arith.constant 9.99999993E-9 : f32
    %20 = vector.broadcast %cst_6 : f32 to vector<32x128xf32>
    %21 = arith.addf %5, %20 : vector<32x128xf32>
    %22 = math.log %21 : vector<32x128xf32>
    %cst_7 = arith.constant 0.000000e+00 : f32
    %23 = vector.broadcast %cst_7 : f32 to vector<32x128xf32>
    %24 = arith.subf %23, %22 : vector<32x128xf32>
    %25 = arith.mulf %19, %24 : vector<32x128xf32>
    %26 = arith.subf %25, %16 : vector<32x128xf32>
    %c0_8 = arith.constant 0 : index
    %c0_9 = arith.constant 0 : index
    %27 = vector.load %arg4[%c0_8, %c0_9] : memref<128x128xf32, #tpu.memory_space<vmem>>, vector<128x128xf32>
    %cst_10 = arith.constant dense<0.000000e+00> : vector<32x128xf32>
    %28 = tpu.matmul %26, %27, %cst_10 {dimension_numbers = #tpu.dot_dimension_numbers<[1], [0], [0], [1], [0, 0, 1, 1], [], []>} : vector<32x128xf32>, vector<128x128xf32>, vector<32x128xf32> -> vector<32x128xf32>
    %c0_11 = arith.constant 0 : index
    %c0_12 = arith.constant 0 : index
    %29 = vector.load %arg2[%c0_11, %c0_12] : memref<32x2xf32, #tpu.memory_space<vmem>>, vector<32x2xf32>
    %30 = vector.extract_strided_slice %29 {offsets = [0, 0], sizes = [32, 1], strides = [1, 1]} : vector<32x2xf32> to vector<32x1xf32>
    %31 = vector.extract_strided_slice %29 {offsets = [0, 1], sizes = [32, 1], strides = [1, 1]} : vector<32x2xf32> to vector<32x1xf32>
    %c0_13 = arith.constant 0 : index
    %c0_14 = arith.constant 0 : index
    %32 = vector.load %arg3[%c0_13, %c0_14] : memref<2x128xf32, #tpu.memory_space<vmem>>, vector<2x128xf32>
    %33 = vector.extract_strided_slice %32 {offsets = [0, 0], sizes = [1, 128], strides = [1, 1]} : vector<2x128xf32> to vector<1x128xf32>
    %34 = vector.extract_strided_slice %32 {offsets = [1, 0], sizes = [1, 128], strides = [1, 1]} : vector<2x128xf32> to vector<1x128xf32>
    %35 = vector.broadcast %30 : vector<32x1xf32> to vector<32x128xf32>
    %36 = vector.broadcast %33 : vector<1x128xf32> to vector<32x128xf32>
    %37 = arith.subf %35, %36 : vector<32x128xf32>
    %38 = math.absf %37 : vector<32x128xf32>
    %39 = vector.broadcast %31 : vector<32x1xf32> to vector<32x128xf32>
    %40 = vector.broadcast %34 : vector<1x128xf32> to vector<32x128xf32>
    %41 = arith.subf %39, %40 : vector<32x128xf32>
    %42 = math.absf %41 : vector<32x128xf32>
    %43 = arith.addf %38, %42 : vector<32x128xf32>
    %cst_15 = arith.constant 5.000000e-01 : f32
    %44 = vector.broadcast %cst_15 : f32 to vector<32x1xf32>
    %45 = arith.mulf %44, %31 : vector<32x1xf32>
    %46 = arith.subf %30, %45 : vector<32x1xf32>
    %cst_16 = arith.constant 5.000000e-01 : f32
    %47 = vector.broadcast %cst_16 : f32 to vector<32x1xf32>
    %48 = arith.mulf %47, %31 : vector<32x1xf32>
    %49 = arith.addf %30, %48 : vector<32x1xf32>
    %cst_17 = arith.constant 5.000000e-01 : f32
    %50 = vector.broadcast %cst_17 : f32 to vector<1x128xf32>
    %51 = arith.mulf %50, %34 : vector<1x128xf32>
    %52 = arith.subf %33, %51 : vector<1x128xf32>
    %cst_18 = arith.constant 5.000000e-01 : f32
    %53 = vector.broadcast %cst_18 : f32 to vector<1x128xf32>
    %54 = arith.mulf %53, %34 : vector<1x128xf32>
    %55 = arith.addf %33, %54 : vector<1x128xf32>
    %56 = vector.broadcast %49 : vector<32x1xf32> to vector<32x128xf32>
    %57 = vector.broadcast %55 : vector<1x128xf32> to vector<32x128xf32>
    %58 = arith.minimumf %56, %57 : vector<32x128xf32>
    %59 = vector.broadcast %46 : vector<32x1xf32> to vector<32x128xf32>
    %60 = vector.broadcast %52 : vector<1x128xf32> to vector<32x128xf32>
    %61 = arith.maximumf %59, %60 : vector<32x128xf32>
    %62 = arith.subf %58, %61 : vector<32x128xf32>
    %cst_19 = arith.constant 0.000000e+00 : f32
    %63 = vector.broadcast %cst_19 : f32 to vector<32x128xf32>
    %64 = arith.maximumf %62, %63 : vector<32x128xf32>
    %65 = arith.subf %49, %46 : vector<32x1xf32>
    %66 = arith.subf %55, %52 : vector<1x128xf32>
    %67 = vector.broadcast %65 : vector<32x1xf32> to vector<32x128xf32>
    %68 = vector.broadcast %66 : vector<1x128xf32> to vector<32x128xf32>
    %69 = arith.addf %67, %68 : vector<32x128xf32>
    %70 = arith.subf %69, %64 : vector<32x128xf32>
    %71 = vector.broadcast %49 : vector<32x1xf32> to vector<32x128xf32>
    %72 = vector.broadcast %55 : vector<1x128xf32> to vector<32x128xf32>
    %73 = arith.maximumf %71, %72 : vector<32x128xf32>
    %74 = vector.broadcast %46 : vector<32x1xf32> to vector<32x128xf32>
    %75 = vector.broadcast %52 : vector<1x128xf32> to vector<32x128xf32>
    %76 = arith.minimumf %74, %75 : vector<32x128xf32>
    %77 = arith.subf %73, %76 : vector<32x128xf32>
    %cst_20 = arith.constant 9.99999996E-13 : f32
    %78 = vector.broadcast %cst_20 : f32 to vector<32x128xf32>
    %79 = arith.maximumf %70, %78 : vector<32x128xf32>
    %cst_21 = arith.constant 1.000000e+00 : f32
    %80 = vector.broadcast %cst_21 : f32 to vector<32x128xf32>
    %81 = arith.divf %80, %79 : vector<32x128xf32>
    %cst_22 = arith.constant 9.99999996E-13 : f32
    %82 = vector.broadcast %cst_22 : f32 to vector<32x128xf32>
    %83 = arith.maximumf %77, %82 : vector<32x128xf32>
    %cst_23 = arith.constant 1.000000e+00 : f32
    %84 = vector.broadcast %cst_23 : f32 to vector<32x128xf32>
    %85 = arith.divf %84, %83 : vector<32x128xf32>
    %86 = arith.mulf %64, %81 : vector<32x128xf32>
    %87 = arith.mulf %70, %85 : vector<32x128xf32>
    %88 = arith.addf %86, %87 : vector<32x128xf32>
    %cst_24 = arith.constant 1.000000e+00 : f32
    %89 = vector.broadcast %cst_24 : f32 to vector<32x128xf32>
    %90 = arith.subf %88, %89 : vector<32x128xf32>
    %cst_25 = arith.constant 1.000000e+00 : f32
    %91 = vector.broadcast %cst_25 : f32 to vector<32x128xf32>
    %92 = arith.mulf %91, %43 : vector<32x128xf32>
    %93 = arith.addf %28, %92 : vector<32x128xf32>
    %cst_26 = arith.constant 1.000000e+00 : f32
    %94 = vector.broadcast %cst_26 : f32 to vector<32x128xf32>
    %95 = arith.mulf %94, %90 : vector<32x128xf32>
    %96 = arith.subf %93, %95 : vector<32x128xf32>
    %c0_27 = arith.constant 0 : index
    %c0_28 = arith.constant 0 : index
    %97 = vector.load %arg5[%c0_27, %c0_28] : memref<32x128xf32, #tpu.memory_space<vmem>>, vector<32x128xf32>
    tpu.vector_store %arg5[%c0_27, %c0_28], %96 {strides = array<i32>} : memref<32x128xf32, #tpu.memory_space<vmem>>, vector<32x128xf32>,
    return
  }
  func.func @transform_0(%arg0: i32) -> (i32, i32) {
    %c0_i32 = arith.constant 0 : i32
    %c0_i32_0 = arith.constant 0 : i32
    return %arg0, %c0_i32 : i32, i32
  }
  func.func @transform_1(%arg0: i32) -> (i32, i32) {
    %c0_i32 = arith.constant 0 : i32
    %c0_i32_0 = arith.constant 0 : i32
    return %arg0, %c0_i32 : i32, i32
  }
  func.func @transform_2(%arg0: i32) -> (i32, i32) {
    %c0_i32 = arith.constant 0 : i32
    %c0_i32_0 = arith.constant 0 : i32
    %c0_i32_1 = arith.constant 0 : i32
    return %c0_i32, %c0_i32_0 : i32, i32
  }
  func.func @transform_3(%arg0: i32) -> (i32, i32) {
    %c0_i32 = arith.constant 0 : i32
    %c0_i32_0 = arith.constant 0 : i32
    %c0_i32_1 = arith.constant 0 : i32
    return %c0_i32, %c0_i32_0 : i32, i32
  }
  func.func @transform_4(%arg0: i32) -> (i32, i32) {
    %c0_i32 = arith.constant 0 : i32
    %c0_i32_0 = arith.constant 0 : i32
    return %arg0, %c0_i32 : i32, i32
  }
}

</mosaic_0001>

<llo_original>
// kernel: _cost_matrix_device.1
$region0: #{_cost_matrix_device.1}
  #allocation0 [shape = 'u32[]', space=smem, size = 0x4, offset = 0x4, fixed_abs, tag = 'smem constant byte address 0x4 - core index']
  #allocation1 [shape = 'u32[144,128]{1,0:T(1,128)}', space=vmem, size = 0x12000, scoped, tag = 'internal scratch']
  %s0 = inlined_call_operand.vmem [shape: f32[32,128], index: 0, kind: input, shape index: {}]
  %s1 = inlined_call_operand.vmem [shape: f32[32,2], index: 1, kind: input, shape index: {}]
  %s2 = inlined_call_operand.vmem [shape: f32[2,128], index: 2, kind: input, shape index: {}]
  %s3 = inlined_call_operand.vmem [shape: f32[128,128], index: 3, kind: input, shape index: {}]
  %s4 = inlined_call_operand.hbm [shape: f32[32,128], index: 4, kind: output, shape index: {}]
  %s5 = sld [smem:[#allocation0]]
  $region26: #{_cost_matrix_device.1} parent=0
    _
  %s7 = ssub.s32 1, %s5
  %s8 = scalar_select 0, %s7, %s5
  $region1: #{_cost_matrix_device.1} parent=0
    #allocation2 [shape = 'u8[16384]{0}', space=vmem, size = 0x4000, scoped, tag = 'output window, operand 0, single buffered']
    #allocation3 [shape = 's32[1]{0}', space=sflag, size = 0x4, scoped, tag = 'scoped memory for _cost_matrix_device.1']
    %9 = vsyncpa [#allocation3], 0
    // Predicated region
    $region2: #{_cost_matrix_device.1} parent=1 // pred_check
      _
    $region3: #{_cost_matrix_device.1} parent=1 // pred_check_branch
      %11 = sbr.rel (0) target = $region5
    $region4: #{_cost_matrix_device.1} parent=1 // pred_region
      _
    $region5: #{_cost_matrix_device.1} parent=1 // pred_fallthru
      _
    // Predicated region
    $region6: #{_cost_matrix_device.1} parent=1 // pred_check
      _
    $region7: #{_cost_matrix_device.1} parent=1 // pred_check_branch
      %13 = sbr.rel (0) target = $region9
    $region8: #{_cost_matrix_device.1} parent=1 // pred_region
      _
    $region9: #{_cost_matrix_device.1} parent=1 // pred_fallthru
      _
    // Predicated region
    $region10: #{_cost_matrix_device.1} parent=1 // pred_check
      _
    $region11: #{_cost_matrix_device.1} parent=1 // pred_check_branch
      %15 = sbr.rel (0) target = $region13
    $region12: #{_cost_matrix_device.1} parent=1 // pred_region
      _
    $region13: #{_cost_matrix_device.1} parent=1 // pred_fallthru
      _
    // Predicated region
    $region14: #{_cost_matrix_device.1} parent=1 // pred_check
      _
    $region15: #{_cost_matrix_device.1} parent=1 // pred_check_branch
      %17 = sbr.rel (0) target = $region17
    $region16: #{_cost_matrix_device.1} parent=1 // pred_region
      _
    $region17: #{_cost_matrix_device.1} parent=1 // pred_fallthru
      _
    %v18 = vld [vmem:[%s0] sm:$0xff]
    %v19 = vld [vmem:[%s0 + $0x8] sm:$0xff]
    %v20 = vld [vmem:[%s0 + $0x10] sm:$0xff]
    %v21 = vld [vmem:[%s0 + $0x18] sm:$0xff]
    %v22 = vxor.u32 %v18, 2147483648
    %v23 = vxor.u32 %v19, 2147483648
    %v24 = vxor.u32 %v20, 2147483648
    %v25 = vxor.u32 %v21, 2147483648
    %v26 = vmul.f32 %v22, 1.442695
    %v27 = vpow.pop %v26
    %v28 = vmul.f32 %v23, 1.442695
    %v29 = vpow.pop %v28
    %v30 = vmul.f32 %v24, 1.442695
    %v31 = vpow.pop %v30
    %v32 = vmul.f32 %v25, 1.442695
    %v33 = vpow.pop %v32
    %v34 = vadd.f32 %v27, 1.0
    %v35 = vadd.f32 %v29, 1.0
    %v36 = vadd.f32 %v31, 1.0
    %v37 = vadd.f32 %v33, 1.0
    %v38 = vrcp.pop %v34
    %v39 = vmul.f32 1.0, %v38
    %v40 = vrcp.pop %v35
    %v41 = vmul.f32 1.0, %v40
    %v42 = vrcp.pop %v36
    %v43 = vmul.f32 1.0, %v42
    %v44 = vrcp.pop %v37
    %v45 = vmul.f32 1.0, %v44
    %v46 = vsub.f32 1.0, %v39
    %v47 = vsub.f32 1.0, %v41
    %v48 = vsub.f32 1.0, %v43
    %v49 = vsub.f32 1.0, %v45
    %v50 = vmul.f32 %v39, %v39
    %v51 = vmul.f32 %v41, %v41
    %v52 = vmul.f32 %v43, %v43
    %v53 = vmul.f32 %v45, %v45
    %v54 = vmul.f32 %v50, 0.75
    %v55 = vmul.f32 %v51, 0.75
    %v56 = vmul.f32 %v52, 0.75
    %v57 = vmul.f32 %v53, 0.75
    %v58 = vadd.f32 %v46, 1e-08
    %v59 = vadd.f32 %v47, 1e-08
    %v60 = vadd.f32 %v48, 1e-08
    %v61 = vadd.f32 %v49, 1e-08
    %v62 = vlog2.pop %v58
    %v63 = vmul.f32 %v62, 0.6931472
    %v64 = vlog2.pop %v59
    %v65 = vmul.f32 %v64, 0.6931472
    %v66 = vlog2.pop %v60
    %v67 = vmul.f32 %v66, 0.6931472
    %v68 = vlog2.pop %v61
    %v69 = vmul.f32 %v68, 0.6931472
    %v70 = vsub.f32 0.0, %v63
    %v71 = vsub.f32 0.0, %v65
    %v72 = vsub.f32 0.0, %v67
    %v73 = vsub.f32 0.0, %v69
    %v74 = vmul.f32 %v54, %v70
    %v75 = vmul.f32 %v55, %v71
    %v76 = vmul.f32 %v56, %v72
    %v77 = vmul.f32 %v57, %v73
    %v78 = vmul.f32 %v46, %v46
    %v79 = vmul.f32 %v47, %v47
    %v80 = vmul.f32 %v48, %v48
    %v81 = vmul.f32 %v49, %v49
    %v82 = vmul.f32 %v78, 0.25
    %v83 = vmul.f32 %v79, 0.25
    %v84 = vmul.f32 %v80, 0.25
    %v85 = vmul.f32 %v81, 0.25
    %v86 = vadd.f32 %v39, 1e-08
    %v87 = vadd.f32 %v41, 1e-08
    %v88 = vadd.f32 %v43, 1e-08
    %v89 = vadd.f32 %v45, 1e-08
    %v90 = vlog2.pop %v86
    %v91 = vmul.f32 %v90, 0.6931472
    %v92 = vlog2.pop %v87
    %v93 = vmul.f32 %v92, 0.6931472
    %v94 = vlog2.pop %v88
    %v95 = vmul.f32 %v94, 0.6931472
    %v96 = vlog2.pop %v89
    %v97 = vmul.f32 %v96, 0.6931472
    %v98 = vsub.f32 0.0, %v91
    %v99 = vsub.f32 0.0, %v93
    %v100 = vsub.f32 0.0, %v95
    %v101 = vsub.f32 0.0, %v97
    %v102 = vmul.f32 %v82, %v98
    %v103 = vmul.f32 %v83, %v99
    %v104 = vmul.f32 %v84, %v100
    %v105 = vmul.f32 %v85, %v101
    %v106 = vsub.f32 %v102, %v74
    %v107 = vsub.f32 %v103, %v75
    %v108 = vsub.f32 %v104, %v76
    %v109 = vsub.f32 %v105, %v77
    %v110 = vld [vmem:[%s3] sm:$0xff]
    %v111 = vld [vmem:[%s3 + $0x8] sm:$0xff]
    %v112 = vld [vmem:[%s3 + $0x10] sm:$0xff]
    %v113 = vld [vmem:[%s3 + $0x18] sm:$0xff]
    %v114 = vld [vmem:[%s3 + $0x20] sm:$0xff]
    %v115 = vld [vmem:[%s3 + $0x28] sm:$0xff]
    %v116 = vld [vmem:[%s3 + $0x30] sm:$0xff]
    %v117 = vld [vmem:[%s3 + $0x38] sm:$0xff]
    %v118 = vld [vmem:[%s3 + $0x40] sm:$0xff]
    %v119 = vld [vmem:[%s3 + $0x48] sm:$0xff]
    %v120 = vld [vmem:[%s3 + $0x50] sm:$0xff]
    %v121 = vld [vmem:[%s3 + $0x58] sm:$0xff]
    %v122 = vld [vmem:[%s3 + $0x60] sm:$0xff]
    %v123 = vld [vmem:[%s3 + $0x68] sm:$0xff]
    %v124 = vld [vmem:[%s3 + $0x70] sm:$0xff]
    %v125 = vld [vmem:[%s3 + $0x78] sm:$0xff]
    %v126 = vld [vmem:[%s1] sm:$0xff]
    %v127 = vld [vmem:[%s1 + $0x8] sm:$0xff]
    %v128 = vld [vmem:[%s1 + $0x10] sm:$0xff]
    %v129 = vld [vmem:[%s1 + $0x18] sm:$0xff]
    %v130 = vld [vmem:[%s2] sm:$0x3]
    %132 = vset.pattern.permute.xlu0 0
    %133 = vperm.xlu0 %132, %v126
    %v134 = vpop.permute.xlu0 %133
    %137 = vset.pattern.permute.xlu0 0
    %138 = vperm.xlu0 %137, %v127
    %v139 = vpop.permute.xlu0 %138
    %142 = vset.pattern.permute.xlu0 0
    %143 = vperm.xlu0 %142, %v128
    %v144 = vpop.permute.xlu0 %143
    %147 = vset.pattern.permute.xlu0 0
    %148 = vperm.xlu0 %147, %v129
    %v149 = vpop.permute.xlu0 %148
    %v151 = vlaneseq
    %v152 = vshrl.u32 %v151, 7
    %v153 = vsub.s32 0, %v152
    %v154 = vrot.slane %v130, %v153
    %v155 = vsub.f32 %v134, %v154
    %v156 = vsub.f32 %v139, %v154
    %v157 = vsub.f32 %v144, %v154
    %v158 = vsub.f32 %v149, %v154
    %v159 = vand.u32 2147483647, %v155
    %v160 = vand.u32 2147483647, %v156
    %v161 = vand.u32 2147483647, %v157
    %v162 = vand.u32 2147483647, %v158
    %163 = vset.pattern.permute.xlu0 1
    %164 = vperm.xlu0 %163, %v126
    %v165 = vpop.permute.xlu0 %164
    %167 = vset.pattern.permute.xlu0 1
    %168 = vperm.xlu0 %167, %v127
    %v169 = vpop.permute.xlu0 %168
    %171 = vset.pattern.permute.xlu0 1
    %172 = vperm.xlu0 %171, %v128
    %v173 = vpop.permute.xlu0 %172
    %175 = vset.pattern.permute.xlu0 1
    %176 = vperm.xlu0 %175, %v129
    %v177 = vpop.permute.xlu0 %176
    %v179 = vlaneseq
    %v180 = vshrl.u32 %v179, 7
    %v181 = vsub.s32 1, %v180
    %v182 = vrot.slane %v130, %v181
    %v183 = vsub.f32 %v165, %v182
    %v184 = vsub.f32 %v169, %v182
    %v185 = vsub.f32 %v173, %v182
    %v186 = vsub.f32 %v177, %v182
    %v187 = vand.u32 2147483647, %v183
    %v188 = vand.u32 2147483647, %v184
    %v189 = vand.u32 2147483647, %v185
    %v190 = vand.u32 2147483647, %v186
    %v191 = vadd.f32 %v159, %v187
    %v192 = vadd.f32 %v160, %v188
    %v193 = vadd.f32 %v161, %v189
    %v194 = vadd.f32 %v162, %v190
    %v195 = vmul.f32 %v126, 0.5
    %v196 = vmul.f32 %v127, 0.5
    %v197 = vmul.f32 %v128, 0.5
    %v198 = vmul.f32 %v129, 0.5
    %203 = vrot.lane.b32.xlu0 %v195, 127
    %v204 = vpop.permute.xlu0 %203
    %205 = vrot.lane.b32.xlu0 %v196, 127
    %v206 = vpop.permute.xlu0 %205
    %207 = vrot.lane.b32.xlu0 %v197, 127
    %v208 = vpop.permute.xlu0 %207
    %209 = vrot.lane.b32.xlu0 %v198, 127
    %v210 = vpop.permute.xlu0 %209
    %v215 = vsub.f32 %v126, %v204
    %v216 = vsub.f32 %v127, %v206
    %v217 = vsub.f32 %v128, %v208
    %v218 = vsub.f32 %v129, %v210
    %v219 = vadd.f32 %v126, %v204
    %v220 = vadd.f32 %v127, %v206
    %v221 = vadd.f32 %v128, %v208
    %v222 = vadd.f32 %v129, %v210
    %v223 = vmul.f32 %v130, 0.5
    %v225 = vrot.slane %v223, 1
    %v227 = vsub.f32 %v130, %v225
    %v228 = vadd.f32 %v130, %v225
    %230 = vset.pattern.permute.xlu0 0
    %231 = vperm.xlu0 %230, %v219
    %v232 = vpop.permute.xlu0 %231
    %235 = vset.pattern.permute.xlu0 0
    %236 = vperm.xlu0 %235, %v220
    %v237 = vpop.permute.xlu0 %236
    %240 = vset.pattern.permute.xlu0 0
    %241 = vperm.xlu0 %240, %v221
    %v242 = vpop.permute.xlu0 %241
    %245 = vset.pattern.permute.xlu0 0
    %246 = vperm.xlu0 %245, %v222
    %v247 = vpop.permute.xlu0 %246
    %v249 = vlaneseq
    %v250 = vshrl.u32 %v249, 7
    %v251 = vsub.s32 0, %v250
    %v252 = vrot.slane %v228, %v251
    %v253 = vmin.f32 %v232, %v252
    %v254 = vmin.f32 %v237, %v252
    %v255 = vmin.f32 %v242, %v252
    %v256 = vmin.f32 %v247, %v252
    %258 = vset.pattern.permute.xlu0 0
    %259 = vperm.xlu0 %258, %v215
    %v260 = vpop.permute.xlu0 %259
    %263 = vset.pattern.permute.xlu0 0
    %264 = vperm.xlu0 %263, %v216
    %v265 = vpop.permute.xlu0 %264
    %268 = vset.pattern.permute.xlu0 0
    %269 = vperm.xlu0 %268, %v217
    %v270 = vpop.permute.xlu0 %269
    %273 = vset.pattern.permute.xlu0 0
    %274 = vperm.xlu0 %273, %v218
    %v275 = vpop.permute.xlu0 %274
    %v277 = vlaneseq
    %v278 = vshrl.u32 %v277, 7
    %v279 = vsub.s32 0, %v278
    %v280 = vrot.slane %v227, %v279
    %v281 = vmax.f32 %v260, %v280
    %v282 = vmax.f32 %v265, %v280
    %v283 = vmax.f32 %v270, %v280
    %v284 = vmax.f32 %v275, %v280
    %v285 = vsub.f32 %v253, %v281
    %v286 = vsub.f32 %v254, %v282
    %v287 = vsub.f32 %v255, %v283
    %v288 = vsub.f32 %v256, %v284
    %v289 = vmax.f32 %v285, 0.0
    %v290 = vmax.f32 %v286, 0.0
    %v291 = vmax.f32 %v287, 0.0
    %v292 = vmax.f32 %v288, 0.0
    %v293 = vsub.f32 %v219, %v215
    %v294 = vsub.f32 %v220, %v216
    %v295 = vsub.f32 %v221, %v217
    %v296 = vsub.f32 %v222, %v218
    %v297 = vsub.f32 %v228, %v227
    %299 = vset.pattern.permute.xlu0 0
    %300 = vperm.xlu0 %299, %v293
    %v301 = vpop.permute.xlu0 %300
    %304 = vset.pattern.permute.xlu0 0
    %305 = vperm.xlu0 %304, %v294
    %v306 = vpop.permute.xlu0 %305
    %309 = vset.pattern.permute.xlu0 0
    %310 = vperm.xlu0 %309, %v295
    %v311 = vpop.permute.xlu0 %310
    %314 = vset.pattern.permute.xlu0 0
    %315 = vperm.xlu0 %314, %v296
    %v316 = vpop.permute.xlu0 %315
    %v318 = vlaneseq
    %v319 = vshrl.u32 %v318, 7
    %v320 = vsub.s32 0, %v319
    %v321 = vrot.slane %v297, %v320
    %v322 = vadd.f32 %v301, %v321
    %v323 = vadd.f32 %v306, %v321
    %v324 = vadd.f32 %v311, %v321
    %v325 = vadd.f32 %v316, %v321
    %v326 = vsub.f32 %v322, %v289
    %v327 = vsub.f32 %v323, %v290
    %v328 = vsub.f32 %v324, %v291
    %v329 = vsub.f32 %v325, %v292
    %v330 = vmax.f32 %v232, %v252
    %v331 = vmax.f32 %v237, %v252
    %v332 = vmax.f32 %v242, %v252
    %v333 = vmax.f32 %v247, %v252
    %v334 = vmin.f32 %v260, %v280
    %v335 = vmin.f32 %v265, %v280
    %v336 = vmin.f32 %v270, %v280
    %v337 = vmin.f32 %v275, %v280
    %v338 = vsub.f32 %v330, %v334
    %v339 = vsub.f32 %v331, %v335
    %v340 = vsub.f32 %v332, %v336
    %v341 = vsub.f32 %v333, %v337
    %v342 = vmax.f32 %v326, 1e-12
    %v343 = vmax.f32 %v327, 1e-12
    %v344 = vmax.f32 %v328, 1e-12
    %v345 = vmax.f32 %v329, 1e-12
    %v346 = vrcp.pop %v342
    %v347 = vmul.f32 1.0, %v346
    %v348 = vrcp.pop %v343
    %v349 = vmul.f32 1.0, %v348
    %v350 = vrcp.pop %v344
    %v351 = vmul.f32 1.0, %v350
    %v352 = vrcp.pop %v345
    %v353 = vmul.f32 1.0, %v352
    %v354 = vmax.f32 %v338, 1e-12
    %v355 = vmax.f32 %v339, 1e-12
    %v356 = vmax.f32 %v340, 1e-12
    %v357 = vmax.f32 %v341, 1e-12
    %v358 = vrcp.pop %v354
    %v359 = vmul.f32 1.0, %v358
    %v360 = vrcp.pop %v355
    %v361 = vmul.f32 1.0, %v360
    %v362 = vrcp.pop %v356
    %v363 = vmul.f32 1.0, %v362
    %v364 = vrcp.pop %v357
    %v365 = vmul.f32 1.0, %v364
    %v366 = vmul.f32 %v289, %v347
    %v367 = vmul.f32 %v290, %v349
    %v368 = vmul.f32 %v291, %v351
    %v369 = vmul.f32 %v292, %v353
    %v370 = vmul.f32 %v326, %v359
    %v371 = vmul.f32 %v327, %v361
    %v372 = vmul.f32 %v328, %v363
    %v373 = vmul.f32 %v329, %v365
    %v374 = vadd.f32 %v366, %v370
    %v375 = vadd.f32 %v367, %v371
    %v376 = vadd.f32 %v368, %v372
    %v377 = vadd.f32 %v369, %v373
    %v378 = vsub.f32 %v374, 1.0
    %v379 = vsub.f32 %v375, 1.0
    %v380 = vsub.f32 %v376, 1.0
    %v381 = vsub.f32 %v377, 1.0
    %382 = vmatprep.subr.mxu0 0.0
    %383 = vmatpush1.msra.mxu0 %v125
    %384 = vmatprep.subr.mxu0 0.0
    %385 = vmatpush1.msra.mxu0 %v124
    %386 = vmatprep.subr.mxu0 0.0
    %387 = vmatpush1.msra.mxu0 %v123
    %388 = vmatprep.subr.mxu0 0.0
    %389 = vmatpush1.msra.mxu0 %v122
    %390 = vmatprep.subr.mxu0 0.0
    %391 = vmatpush1.msra.mxu0 %v121
    %392 = vmatprep.subr.mxu0 0.0
    %393 = vmatpush1.msra.mxu0 %v120
    %394 = vmatprep.subr.mxu0 0.0
    %395 = vmatpush1.msra.mxu0 %v119
    %396 = vmatprep.subr.mxu0 0.0
    %397 = vmatpush1.msra.mxu0 %v118
    %398 = vmatprep.subr.mxu0 0.0
    %399 = vmatpush1.msra.mxu0 %v117
    %400 = vmatprep.subr.mxu0 0.0
    %401 = vmatpush1.msra.mxu0 %v116
    %402 = vmatprep.subr.mxu0 0.0
    %403 = vmatpush1.msra.mxu0 %v115
    %404 = vmatprep.subr.mxu0 0.0
    %405 = vmatpush1.msra.mxu0 %v114
    %406 = vmatprep.subr.mxu0 0.0
    %407 = vmatpush1.msra.mxu0 %v113
    %408 = vmatprep.subr.mxu0 0.0
    %409 = vmatpush1.msra.mxu0 %v112
    %410 = vmatprep.subr.mxu0 0.0
    %411 = vmatpush1.msra.mxu0 %v111
    %412 = vmatprep.subr.mxu0 0.0
    %413 = vmatpush1.msra.mxu0 %v110
    %414 = vmatprep.subr.mxu0 0.0
    %415 = vmatpush2.msra.mxu0 0.0
    %416 = vmatprep.subr.mxu0 0.0
    %417 = vmatpush2.msra.mxu0 0.0
    %418 = vmatprep.subr.mxu0 0.0
    %419 = vmatpush2.msra.mxu0 0.0
    %420 = vmatprep.subr.mxu0 0.0
    %421 = vmatpush2.msra.mxu0 0.0
    %422 = vmatprep.subr.mxu0 0.0
    %423 = vmatpush2.msra.mxu0 0.0
    %424 = vmatprep.subr.mxu0 0.0
    %425 = vmatpush2.msra.mxu0 0.0
    %426 = vmatprep.subr.mxu0 0.0
    %427 = vmatpush2.msra.mxu0 0.0
    %428 = vmatprep.subr.mxu0 0.0
    %429 = vmatpush2.msra.mxu0 0.0
    %430 = vmatprep.subr.mxu0 0.0
    %431 = vmatpush2.msra.mxu0 0.0
    %432 = vmatprep.subr.mxu0 0.0
    %433 = vmatpush2.msra.mxu0 0.0
    %434 = vmatprep.subr.mxu0 0.0
    %435 = vmatpush2.msra.mxu0 0.0
    %436 = vmatprep.subr.mxu0 0.0
    %437 = vmatpush2.msra.mxu0 0.0
    %438 = vmatprep.subr.mxu0 0.0
    %439 = vmatpush2.msra.mxu0 0.0
    %440 = vmatprep.subr.mxu0 0.0
    %441 = vmatpush2.msra.mxu0 0.0
    %442 = vmatprep.subr.mxu0 0.0
    %443 = vmatpush2.msra.mxu0 0.0
    %444 = vmatprep.subr.mxu0 0.0
    %445 = vmatpush2.msra.mxu0 0.0
    %446 = vmatprep.mubr.f32.mxu0 0.0
    %447 = vmatmul.mubr.f32.gmra.mxu0 %v106
    %v448 = vpop.f32.mrf.mxu0
    %v449 = vadd.f32 %v191, %v448
    %v450 = vpop.f32.mrf.mxu0
    %451 = vmatprep.mubr.f32.mxu0 0.0
    %452 = vmatmul.mubr.f32.gmra.mxu0 %v107
    %v453 = vpop.f32.mrf.mxu0
    %v454 = vadd.f32 %v192, %v453
    %v455 = vpop.f32.mrf.mxu0
    %456 = vmatprep.mubr.f32.mxu0 0.0
    %457 = vmatmul.mubr.f32.gmra.mxu0 %v108
    %v458 = vpop.f32.mrf.mxu0
    %v459 = vadd.f32 %v193, %v458
    %v460 = vpop.f32.mrf.mxu0
    %461 = vmatprep.mubr.f32.mxu0 0.0
    %462 = vmatmul.mubr.f32.gmra.mxu0 %v109
    %v463 = vpop.f32.mrf.mxu0
    %v464 = vadd.f32 %v194, %v463
    %v465 = vpop.f32.mrf.mxu0
    %466 = vdwg.mxu0
    %v467 = vsub.f32 %v449, %v378
    %v468 = vsub.f32 %v454, %v379
    %v469 = vsub.f32 %v459, %v380
    %v470 = vsub.f32 %v464, %v381
    %471 = vst [vmem:[#allocation2] sm:$0xff] %v467
    %472 = vst [vmem:[#allocation2 + $0x8] sm:$0xff] %v468
    %473 = vst [vmem:[#allocation2 + $0x10] sm:$0xff] %v469
    %474 = vst [vmem:[#allocation2 + $0x18] sm:$0xff] %v470
    // Predicated region
    $region18: #{_cost_matrix_device.1} parent=1 // pred_check
      _
    $region19: #{_cost_matrix_device.1} parent=1 // pred_check_branch
      %476 = sbr.rel (0) target = $region21
    $region20: #{_cost_matrix_device.1} parent=1 // pred_region
      %s478 = ssub.s32 512, 512
      %479 = vsyncadd [#allocation3], %s478
      %s480 = sshll.u32 [#allocation2], 4
      %s481 = int_to_ptr.vmem [resolvable:$true] %s480
      %486 = dma.vmem_to_hbm [thread:$0]  %s481, 512, %s4, [#allocation3], 128, 128, 8
    $region21: #{_cost_matrix_device.1} parent=1 // pred_fallthru
      _
    // Predicated region
    $region22: #{_cost_matrix_device.1} parent=1 // pred_check
      _
    $region23: #{_cost_matrix_device.1} parent=1 // pred_check_branch
      %488 = sbr.rel (0) target = $region25
    $region24: #{_cost_matrix_device.1} parent=1 // pred_region
      %489 = dma.done [#allocation3], 512
    $region25: #{_cost_matrix_device.1} parent=1 // pred_fallthru
      _
    %490 = vsyncpa [#allocation3], 1

</llo_original>
